<compile_context>
chip_gen: v5e
topology: v5e:2x2
jax: 0.10.0
libtpu: 0.0.40
codegen_flags: <defaults>
</compile_context>

<pallas_src>
import functools

import jax
import jax.numpy as jnp
import numpy as np
from jax import lax
from jax.experimental import pallas as pl
from jax.experimental.pallas import tpu as pltpu


def _round_up(x, m):
    return (x + m - 1) // m * m


# ----------------------------------------------------------------------------
# Fused Pallas kernel: conv0+bn0+relu -> conv1+bn1 -> (+ downsample+bn+relu)
# -> relu, one batch element per grid step, everything resident in VMEM.
# ----------------------------------------------------------------------------
def _fused_kernel(x_ref, w0_ref, w1_ref, wd_ref,
                  s0_ref, sh0_ref, s1_ref, sh1_ref, sd_ref, shd_ref,
                  out_ref, xpad_ref, x1pad_ref,
                  *, K0, dil0, K1, dil1, T, left0, left1, cdtype):
    cin0 = x_ref.shape[1]       # un-padded input channels
    cout0 = s0_ref.shape[0]     # un-padded stage-0 output channels

    # ---- stage-0 input, 'same'-padded directly in VMEM (no HBM pad copy) ---
    xpad_ref[...] = jnp.zeros_like(xpad_ref)
    xpad_ref[:cin0, left0:left0 + T] = x_ref[0]

    def im2col(src_ref, K, dil):
        # Stack the K dilated taps along sublanes -> (K * C_pad, T).
        taps = [src_ref[:, kk * dil: kk * dil + T] for kk in range(K)]
        stacked = taps[0] if K == 1 else jnp.concatenate(taps, axis=0)
        return stacked.astype(cdtype)

    # ---- stage 0: single im2col matmul + folded (bias+BN) affine + ReLU ----
    y0 = jnp.dot(w0_ref[...], im2col(xpad_ref, K0, dil0),
                 preferred_element_type=jnp.float32)
    y0 = jnp.maximum(y0 * s0_ref[...] + sh0_ref[...], 0.0)      # f32 epilogue

    # ---- stage-1 intermediate stays in VMEM (padded), never touches HBM ----
    x1pad_ref[...] = jnp.zeros_like(x1pad_ref)
    x1pad_ref[:cout0, left1:left1 + T] = y0

    y1 = jnp.dot(w1_ref[...], im2col(x1pad_ref, K1, dil1),
                 preferred_element_type=jnp.float32)
    y1 = y1 * s1_ref[...] + sh1_ref[...]

    # ---- residual: 1x1 conv + BN + ReLU, reusing the VMEM copy of x --------
    res = jnp.dot(wd_ref[...], xpad_ref[:, left0:left0 + T].astype(cdtype),
                  preferred_element_type=jnp.float32)
    res = jnp.maximum(res * sd_ref[...] + shd_ref[...], 0.0)

    out_ref[0] = jnp.maximum(y1 + res, 0.0).astype(out_ref.dtype)


# ----------------------------------------------------------------------------
# Host wrapper: parameter folding / flattening, single pallas_call.
# ----------------------------------------------------------------------------
def temp_block1_forward(x_nct, params, *, compute_dtype=jnp.bfloat16,
                        bn_eps=1e-5):
    """x_nct: (N, C_in0, T) like the PyTorch module. Returns (N, C_out1, T)."""
    N, Cin0, T = x_nct.shape
    K0, dil0 = params["k0"], params["dil0"]
    K1, dil1 = params["k1"], params["dil1"]
    w0 = params["w0"]            # (Cout0, Cin0, K0)  -- PyTorch layout
    w1 = params["w1"]            # (Cout1, Cout0, K1)
    wd = params["w_ds"]          # (Cout1, Cin0, 1)
    Cout0, Cout1 = w0.shape[0], w1.shape[0]

    # Fold BatchNorm (eval mode) and the conv bias into a single affine.
    def fold(bn, bias):
        gamma, beta, mean, var = bn
        scale = gamma / jnp.sqrt(var + bn_eps)
        shift = beta - mean * scale + bias * scale      # bias folded in
        return (scale.reshape(-1, 1).astype(jnp.float32),
                shift.reshape(-1, 1).astype(jnp.float32))

    s0, sh0 = fold(params["bn0"], params["b0"])
    s1, sh1 = fold(params["bn1"], params["b1"])
    sd, shd = fold(params["bn_ds"], params["b_ds"])

    # Flatten weights for the im2col matmul: (Co, Ci, K) -> (Co, K*Ci_pad),
    # zero-padding the input-channel dim to a multiple of 8 (sublane tile) so
    # the in-kernel sublane concatenation is tile-aligned.
    SUB = 8
    Cin0_p = _round_up(Cin0, SUB)
    Cout0_p = _round_up(Cout0, SUB)

    def flat_w(w, ci_pad):
        Co, Ci, K = w.shape
        wp = jnp.zeros((Co, K, ci_pad), jnp.float32)
        wp = wp.at[:, :, :Ci].set(jnp.transpose(w, (0, 2, 1)))
        return wp.reshape(Co, K * ci_pad).astype(compute_dtype)

    w0f = flat_w(w0, Cin0_p)     # (Cout0, K0*Cin0_p)
    w1f = flat_w(w1, Cout0_p)    # (Cout1, K1*Cout0_p)
    wdf = flat_w(wd, Cin0_p)     # (Cout1, Cin0_p)

    left0 = (dil0 * (K0 - 1)) // 2                 # PyTorch 'same' convention
    left1 = (dil1 * (K1 - 1)) // 2
    Tp0 = T + dil0 * (K0 - 1)
    Tp1 = T + dil1 * (K1 - 1)

    kernel = functools.partial(
        _fused_kernel, K0=K0, dil0=dil0, K1=K1, dil1=dil1,
        T=T, left0=left0, left1=left1, cdtype=compute_dtype)

    # TODO(synk): for production sequence lengths add a T-tile grid axis with a
    # dil*(K-1) halo (manual DMA) so blocks stay under v7x's 64 MiB VMEM and
    # both v7x TensorCores get >= 4-8 parallel grid points; raise
    # vmem_limit_bytes on v5e/v6e for large T tiles.
    return pl.pallas_call(
        kernel,
        out_shape=jax.ShapeDtypeStruct((N, Cout1, T), jnp.float32),
        grid=(N,),
        in_specs=[
            pl.BlockSpec((1, Cin0, T), lambda n: (n, 0, 0)),
            # Weight / affine blocks have constant index maps -> fetched once,
            # stay resident across the batch grid.
            pl.BlockSpec(w0f.shape, lambda n: (0, 0)),
            pl.BlockSpec(w1f.shape, lambda n: (0, 0)),
            pl.BlockSpec(wdf.shape, lambda n: (0, 0)),
            pl.BlockSpec(s0.shape, lambda n: (0, 0)),
            pl.BlockSpec(sh0.shape, lambda n: (0, 0)),
            pl.BlockSpec(s1.shape, lambda n: (0, 0)),
            pl.BlockSpec(sh1.shape, lambda n: (0, 0)),
            pl.BlockSpec(sd.shape, lambda n: (0, 0)),
            pl.BlockSpec(shd.shape, lambda n: (0, 0)),
        ],
        out_specs=pl.BlockSpec((1, Cout1, T), lambda n: (n, 0, 0)),
        scratch_shapes=[
            pltpu.VMEM((Cin0_p, Tp0), jnp.float32),    # padded input
            pltpu.VMEM((Cout0_p, Tp1), jnp.float32),   # padded stage-0 output
        ],
        compiler_params=pltpu.CompilerParams(
            dimension_semantics=("parallel",)),
    )(x_nct, w0f, w1f, wdf, s0, sh0, s1, sh1, sd, shd)


# ----------------------------------------------------------------------------
# Pure-JAX reference (lax.conv) for correctness.
# ----------------------------------------------------------------------------
def _ref_conv(x_nct, w_oik, b, dil):
    K = w_oik.shape[-1]
    total = dil * (K - 1)
    left = total // 2
    y = lax.conv_general_dilated(
        x_nct, w_oik, window_strides=(1,), padding=[(left, total - left)],
        rhs_dilation=(dil,), dimension_numbers=("NCH", "OIH", "NCH"))
    return y + b[None, :, None]


def temp_block1_ref(x_nct, params, bn_eps=1e-5):
    def bn(y, p):
        g, b, m, v = p
        s = g / jnp.sqrt(v + bn_eps)
        sh = b - m * s
        return y * s[None, :, None] + sh[None, :, None]

    x1 = jax.nn.relu(bn(_ref_conv(x_nct, params["w0"], params["b0"],
                                  params["dil0"]), params["bn0"]))
    x2 = bn(_ref_conv(x1, params["w1"], params["b1"], params["dil1"]),
            params["bn1"])
    res = jax.nn.relu(bn(_ref_conv(x_nct, params["w_ds"], params["b_ds"], 1),
                         params["bn_ds"]))
    return jax.nn.relu(x2 + res)


# ----------------------------------------------------------------------------
# Deterministic parameters (mirrors nn.Conv1d / nn.BatchNorm1d shapes).
# ----------------------------------------------------------------------------
def make_params(key, ch_in, ch_out, k_size, dil):
    ci0, ci1 = ch_in
    co0, co1 = ch_out
    k0, k1 = k_size
    d0, d1 = dil
    keys = jax.random.split(key, 9)

    def conv_w(k, co, ci, ksz):   # PyTorch Conv1d weight layout (Co, Ci, K)
        return (0.01 * jax.random.normal(k, (co, ci, ksz))).astype(jnp.float32)

    def bn_params(k, c):
        g = 1.0 + 0.1 * jax.random.normal(k, (c,))
        b = 0.05 * jax.random.normal(jax.random.fold_in(k, 1), (c,))
        m = 0.02 * jax.random.normal(jax.random.fold_in(k, 2), (c,))
        v = 1.0 + 0.1 * jnp.abs(jax.random.normal(jax.random.fold_in(k, 3), (c,)))
        return tuple(a.astype(jnp.float32) for a in (g, b, m, v))

    return {
        "k0": k0, "k1": k1, "dil0": d0, "dil1": d1,
        "w0": conv_w(keys[0], co0, ci0, k0),
        "b0": (0.01 * jax.random.normal(keys[1], (co0,))).astype(jnp.float32),
        "w1": conv_w(keys[2], co1, ci1, k1),
        "b1": (0.01 * jax.random.normal(keys[3], (co1,))).astype(jnp.float32),
        "w_ds": conv_w(keys[4], co1, ci0, 1),
        "b_ds": (0.01 * jax.random.normal(keys[5], (co1,))).astype(jnp.float32),
        "bn0": bn_params(keys[6], co0),
        "bn1": bn_params(keys[7], co1),
        "bn_ds": bn_params(keys[8], co1),
    }


if __name__ == "__main__":
    key = jax.random.PRNGKey(0)
    k_x, k_p = jax.random.split(key)

    # Module-consistent small shapes: ch_in=(4,8), ch_out=(8,8), k=(3,3), dil=(1,2)
    N, C_IN0, T = 2, 4, 16
    params = make_params(k_p, ch_in=(4, 8), ch_out=(8, 8),
                         k_size=(3, 3), dil=(1, 2))
    x = jax.random.normal(k_x, (N, C_IN0, T), dtype=jnp.float32)  # PyTorch NCT

    ref = jax.block_until_ready(temp_block1_ref(x, params))

    # Exact-math check: f32 matmul inputs.
    out_f32 = jax.block_until_ready(
        temp_block1_forward(x, params, compute_dtype=jnp.float32))
    assert out_f32.shape == (N, 8, T), out_f32.shape
    np.testing.assert_allclose(np.asarray(out_f32), np.asarray(ref),
                               rtol=1e-4, atol=1e-4)

    # Fast path: bf16 matmul inputs, f32 MXU accumulation + f32 epilogue.
    out_bf16 = jax.block_until_ready(
        temp_block1_forward(x, params, compute_dtype=jnp.bfloat16))
    np.testing.assert_allclose(np.asarray(out_bf16), np.asarray(ref),
                               rtol=2e-2, atol=2e-3)

    print("KERNEL_OK")
</pallas_src>

<mosaic_0001>
module attributes {stable_mosaic.version = 11 : i64} {
  func.func @_fused_kernel(%arg0: i32, %arg1: memref<1x4x16xf32, #tpu.memory_space<vmem>>, %arg2: memref<8x24xf32, #tpu.memory_space<vmem>>, %arg3: memref<8x24xf32, #tpu.memory_space<vmem>>, %arg4: memref<8x8xf32, #tpu.memory_space<vmem>>, %arg5: memref<8x1xf32, #tpu.memory_space<vmem>>, %arg6: memref<8x1xf32, #tpu.memory_space<vmem>>, %arg7: memref<8x1xf32, #tpu.memory_space<vmem>>, %arg8: memref<8x1xf32, #tpu.memory_space<vmem>>, %arg9: memref<8x1xf32, #tpu.memory_space<vmem>>, %arg10: memref<8x1xf32, #tpu.memory_space<vmem>>, %arg11: memref<1x8x16xf32, #tpu.memory_space<vmem>>, %arg12: memref<8x18xf32, #tpu.memory_space<vmem>>, %arg13: memref<8x20xf32, #tpu.memory_space<vmem>>) attributes {dimension_semantics = [#tpu.dimension_semantics<parallel>], iteration_bounds = array<i64: 2>, scalar_prefetch = 0 : i64, scratch_operands = 2 : i64, tpu.core_type = #tpu.core_type<tc>, window_params = [{transform_indices = @transform_0, window_bounds = array<i64: 1, 4, 16>}, {pipeline_mode = #tpu.pipeline_mode<synchronous>, transform_indices = @transform_1, window_bounds = array<i64: 8, 24>}, {pipeline_mode = #tpu.pipeline_mode<synchronous>, transform_indices = @transform_2, window_bounds = array<i64: 8, 24>}, {pipeline_mode = #tpu.pipeline_mode<synchronous>, transform_indices = @transform_3, window_bounds = array<i64: 8, 8>}, {pipeline_mode = #tpu.pipeline_mode<synchronous>, transform_indices = @transform_4, window_bounds = array<i64: 8, 1>}, {pipeline_mode = #tpu.pipeline_mode<synchronous>, transform_indices = @transform_5, window_bounds = array<i64: 8, 1>}, {pipeline_mode = #tpu.pipeline_mode<synchronous>, transform_indices = @transform_6, window_bounds = array<i64: 8, 1>}, {pipeline_mode = #tpu.pipeline_mode<synchronous>, transform_indices = @transform_7, window_bounds = array<i64: 8, 1>}, {pipeline_mode = #tpu.pipeline_mode<synchronous>, transform_indices = @transform_8, window_bounds = array<i64: 8, 1>}, {pipeline_mode = #tpu.pipeline_mode<synchronous>, transform_indices = @transform_9, window_bounds = array<i64: 8, 1>}, {transform_indices = @transform_10, window_bounds = array<i64: 1, 8, 16>}]} {
    %cst = arith.constant 0.000000e+00 : f32
    %0 = vector.broadcast %cst : f32 to vector<8x18xf32>
    %c0 = arith.constant 0 : index
    %c0_0 = arith.constant 0 : index
    %1 = vector.load %arg12[%c0, %c0_0] : memref<8x18xf32, #tpu.memory_space<vmem>>, vector<8x18xf32>
    tpu.vector_store %arg12[%c0, %c0_0], %0 {strides = array<i32>} : memref<8x18xf32, #tpu.memory_space<vmem>>, vector<8x18xf32>,
    %c0_1 = arith.constant 0 : index
    %c0_2 = arith.constant 0 : index
    %c0_3 = arith.constant 0 : index
    %2 = vector.load %arg1[%c0_1, %c0_2, %c0_3] : memref<1x4x16xf32, #tpu.memory_space<vmem>>, vector<1x4x16xf32>
    %3 = vector.shape_cast %2 : vector<1x4x16xf32> to vector<4x16xf32>
    %c0_4 = arith.constant 0 : index
    %c1 = arith.constant 1 : index
    %4 = vector.load %arg12[%c0_4, %c1] : memref<8x18xf32, #tpu.memory_space<vmem>>, vector<4x16xf32>
    tpu.vector_store %arg12[%c0_4, %c1], %3 {strides = array<i32>} : memref<8x18xf32, #tpu.memory_space<vmem>>, vector<4x16xf32>,
    %c0_5 = arith.constant 0 : index
    %c0_6 = arith.constant 0 : index
    %5 = vector.load %arg2[%c0_5, %c0_6] : memref<8x24xf32, #tpu.memory_space<vmem>>, vector<8x24xf32>
    %c0_7 = arith.constant 0 : index
    %c0_8 = arith.constant 0 : index
    %6 = vector.load %arg12[%c0_7, %c0_8] : memref<8x18xf32, #tpu.memory_space<vmem>>, vector<8x16xf32>
    %c0_9 = arith.constant 0 : index
    %c1_10 = arith.constant 1 : index
    %7 = vector.load %arg12[%c0_9, %c1_10] : memref<8x18xf32, #tpu.memory_space<vmem>>, vector<8x16xf32>
    %c0_11 = arith.constant 0 : index
    %c2 = arith.constant 2 : index
    %8 = vector.load %arg12[%c0_11, %c2] : memref<8x18xf32, #tpu.memory_space<vmem>>, vector<8x16xf32>
    %9 = tpu.concatenate %6, %7, %8 in 0 : vector<8x16xf32>, vector<8x16xf32>, vector<8x16xf32> -> vector<24x16xf32>
    %cst_12 = arith.constant dense<0.000000e+00> : vector<8x16xf32>
    %10 = tpu.matmul %5, %9, %cst_12 {dimension_numbers = #tpu.dot_dimension_numbers<[1], [0], [0], [1], [0, 0, 1, 1], [], []>} : vector<8x24xf32>, vector<24x16xf32>, vector<8x16xf32> -> vector<8x16xf32>
    %c0_13 = arith.constant 0 : index
    %c0_14 = arith.constant 0 : index
    %11 = vector.load %arg5[%c0_13, %c0_14] : memref<8x1xf32, #tpu.memory_space<vmem>>, vector<8x1xf32>
    %12 = vector.broadcast %11 : vector<8x1xf32> to vector<8x16xf32>
    %13 = arith.mulf %10, %12 : vector<8x16xf32>
    %c0_15 = arith.constant 0 : index
    %c0_16 = arith.constant 0 : index
    %14 = vector.load %arg6[%c0_15, %c0_16] : memref<8x1xf32, #tpu.memory_space<vmem>>, vector<8x1xf32>
    %15 = vector.broadcast %14 : vector<8x1xf32> to vector<8x16xf32>
    %16 = arith.addf %13, %15 : vector<8x16xf32>
    %cst_17 = arith.constant 0.000000e+00 : f32
    %17 = vector.broadcast %cst_17 : f32 to vector<8x16xf32>
    %18 = arith.maximumf %16, %17 : vector<8x16xf32>
    %cst_18 = arith.constant 0.000000e+00 : f32
    %19 = vector.broadcast %cst_18 : f32 to vector<8x20xf32>
    %c0_19 = arith.constant 0 : index
    %c0_20 = arith.constant 0 : index
    %20 = vector.load %arg13[%c0_19, %c0_20] : memref<8x20xf32, #tpu.memory_space<vmem>>, vector<8x20xf32>
    tpu.vector_store %arg13[%c0_19, %c0_20], %19 {strides = array<i32>} : memref<8x20xf32, #tpu.memory_space<vmem>>, vector<8x20xf32>,
    %c0_21 = arith.constant 0 : index
    %c2_22 = arith.constant 2 : index
    %21 = vector.load %arg13[%c0_21, %c2_22] : memref<8x20xf32, #tpu.memory_space<vmem>>, vector<8x16xf32>
    tpu.vector_store %arg13[%c0_21, %c2_22], %18 {strides = array<i32>} : memref<8x20xf32, #tpu.memory_space<vmem>>, vector<8x16xf32>,
    %c0_23 = arith.constant 0 : index
    %c0_24 = arith.constant 0 : index
    %22 = vector.load %arg3[%c0_23, %c0_24] : memref<8x24xf32, #tpu.memory_space<vmem>>, vector<8x24xf32>
    %c0_25 = arith.constant 0 : index
    %c0_26 = arith.constant 0 : index
    %23 = vector.load %arg13[%c0_25, %c0_26] : memref<8x20xf32, #tpu.memory_space<vmem>>, vector<8x16xf32>
    %c0_27 = arith.constant 0 : index
    %c2_28 = arith.constant 2 : index
    %24 = vector.load %arg13[%c0_27, %c2_28] : memref<8x20xf32, #tpu.memory_space<vmem>>, vector<8x16xf32>
    %c0_29 = arith.constant 0 : index
    %c4 = arith.constant 4 : index
    %25 = vector.load %arg13[%c0_29, %c4] : memref<8x20xf32, #tpu.memory_space<vmem>>, vector<8x16xf32>
    %26 = tpu.concatenate %23, %24, %25 in 0 : vector<8x16xf32>, vector<8x16xf32>, vector<8x16xf32> -> vector<24x16xf32>
    %cst_30 = arith.constant dense<0.000000e+00> : vector<8x16xf32>
    %27 = tpu.matmul %22, %26, %cst_30 {dimension_numbers = #tpu.dot_dimension_numbers<[1], [0], [0], [1], [0, 0, 1, 1], [], []>} : vector<8x24xf32>, vector<24x16xf32>, vector<8x16xf32> -> vector<8x16xf32>
    %c0_31 = arith.constant 0 : index
    %c0_32 = arith.constant 0 : index
    %28 = vector.load %arg7[%c0_31, %c0_32] : memref<8x1xf32, #tpu.memory_space<vmem>>, vector<8x1xf32>
    %29 = vector.broadcast %28 : vector<8x1xf32> to vector<8x16xf32>
    %30 = arith.mulf %27, %29 : vector<8x16xf32>
    %c0_33 = arith.constant 0 : index
    %c0_34 = arith.constant 0 : index
    %31 = vector.load %arg8[%c0_33, %c0_34] : memref<8x1xf32, #tpu.memory_space<vmem>>, vector<8x1xf32>
    %32 = vector.broadcast %31 : vector<8x1xf32> to vector<8x16xf32>
    %33 = arith.addf %30, %32 : vector<8x16xf32>
    %c0_35 = arith.constant 0 : index
    %c0_36 = arith.constant 0 : index
    %34 = vector.load %arg4[%c0_35, %c0_36] : memref<8x8xf32, #tpu.memory_space<vmem>>, vector<8x8xf32>
    %c0_37 = arith.constant 0 : index
    %c1_38 = arith.constant 1 : index
    %35 = vector.load %arg12[%c0_37, %c1_38] : memref<8x18xf32, #tpu.memory_space<vmem>>, vector<8x16xf32>
    %cst_39 = arith.constant dense<0.000000e+00> : vector<8x16xf32>
    %36 = tpu.matmul %34, %35, %cst_39 {dimension_numbers = #tpu.dot_dimension_numbers<[1], [0], [0], [1], [0, 0, 1, 1], [], []>} : vector<8x8xf32>, vector<8x16xf32>, vector<8x16xf32> -> vector<8x16xf32>
    %c0_40 = arith.constant 0 : index
    %c0_41 = arith.constant 0 : index
    %37 = vector.load %arg9[%c0_40, %c0_41] : memref<8x1xf32, #tpu.memory_space<vmem>>, vector<8x1xf32>
    %38 = vector.broadcast %37 : vector<8x1xf32> to vector<8x16xf32>
    %39 = arith.mulf %36, %38 : vector<8x16xf32>
    %c0_42 = arith.constant 0 : index
    %c0_43 = arith.constant 0 : index
    %40 = vector.load %arg10[%c0_42, %c0_43] : memref<8x1xf32, #tpu.memory_space<vmem>>, vector<8x1xf32>
    %41 = vector.broadcast %40 : vector<8x1xf32> to vector<8x16xf32>
    %42 = arith.addf %39, %41 : vector<8x16xf32>
    %cst_44 = arith.constant 0.000000e+00 : f32
    %43 = vector.broadcast %cst_44 : f32 to vector<8x16xf32>
    %44 = arith.maximumf %42, %43 : vector<8x16xf32>
    %45 = arith.addf %33, %44 : vector<8x16xf32>
    %cst_45 = arith.constant 0.000000e+00 : f32
    %46 = vector.broadcast %cst_45 : f32 to vector<8x16xf32>
    %47 = arith.maximumf %45, %46 : vector<8x16xf32>
    %c0_46 = arith.constant 0 : index
    %c0_47 = arith.constant 0 : index
    %c0_48 = arith.constant 0 : index
    %48 = vector.load %arg11[%c0_46, %c0_47, %c0_48] : memref<1x8x16xf32, #tpu.memory_space<vmem>>, vector<1x8x16xf32>
    %49 = vector.shape_cast %48 : vector<1x8x16xf32> to vector<8x16xf32>
    %50 = vector.shape_cast %47 : vector<8x16xf32> to vector<1x8x16xf32>
    tpu.vector_store %arg11[%c0_46, %c0_47, %c0_48], %50 {strides = array<i32>} : memref<1x8x16xf32, #tpu.memory_space<vmem>>, vector<1x8x16xf32>,
    return
  }
  func.func @transform_0(%arg0: i32) -> (i32, i32, i32) {
    %c0_i32 = arith.constant 0 : i32
    %c0_i32_0 = arith.constant 0 : i32
    %c0_i32_1 = arith.constant 0 : i32
    return %arg0, %c0_i32, %c0_i32_0 : i32, i32, i32
  }
  func.func @transform_1(%arg0: i32) -> (i32, i32) {
    %c0_i32 = arith.constant 0 : i32
    %c0_i32_0 = arith.constant 0 : i32
    %c0_i32_1 = arith.constant 0 : i32
    return %c0_i32, %c0_i32_0 : i32, i32
  }
  func.func @transform_2(%arg0: i32) -> (i32, i32) {
    %c0_i32 = arith.constant 0 : i32
    %c0_i32_0 = arith.constant 0 : i32
    %c0_i32_1 = arith.constant 0 : i32
    return %c0_i32, %c0_i32_0 : i32, i32
  }
  func.func @transform_3(%arg0: i32) -> (i32, i32) {
    %c0_i32 = arith.constant 0 : i32
    %c0_i32_0 = arith.constant 0 : i32
    %c0_i32_1 = arith.constant 0 : i32
    return %c0_i32, %c0_i32_0 : i32, i32
  }
  func.func @transform_4(%arg0: i32) -> (i32, i32) {
    %c0_i32 = arith.constant 0 : i32
    %c0_i32_0 = arith.constant 0 : i32
    %c0_i32_1 = arith.constant 0 : i32
    return %c0_i32, %c0_i32_0 : i32, i32
  }
  func.func @transform_5(%arg0: i32) -> (i32, i32) {
    %c0_i32 = arith.constant 0 : i32
    %c0_i32_0 = arith.constant 0 : i32
    %c0_i32_1 = arith.constant 0 : i32
    return %c0_i32, %c0_i32_0 : i32, i32
  }
  func.func @transform_6(%arg0: i32) -> (i32, i32) {
    %c0_i32 = arith.constant 0 : i32
    %c0_i32_0 = arith.constant 0 : i32
    %c0_i32_1 = arith.constant 0 : i32
    return %c0_i32, %c0_i32_0 : i32, i32
  }
  func.func @transform_7(%arg0: i32) -> (i32, i32) {
    %c0_i32 = arith.constant 0 : i32
    %c0_i32_0 = arith.constant 0 : i32
    %c0_i32_1 = arith.constant 0 : i32
    return %c0_i32, %c0_i32_0 : i32, i32
  }
  func.func @transform_8(%arg0: i32) -> (i32, i32) {
    %c0_i32 = arith.constant 0 : i32
    %c0_i32_0 = arith.constant 0 : i32
    %c0_i32_1 = arith.constant 0 : i32
    return %c0_i32, %c0_i32_0 : i32, i32
  }
  func.func @transform_9(%arg0: i32) -> (i32, i32) {
    %c0_i32 = arith.constant 0 : i32
    %c0_i32_0 = arith.constant 0 : i32
    %c0_i32_1 = arith.constant 0 : i32
    return %c0_i32, %c0_i32_0 : i32, i32
  }
  func.func @transform_10(%arg0: i32) -> (i32, i32, i32) {
    %c0_i32 = arith.constant 0 : i32
    %c0_i32_0 = arith.constant 0 : i32
    %c0_i32_1 = arith.constant 0 : i32
    return %arg0, %c0_i32, %c0_i32_0 : i32, i32, i32
  }
}

</mosaic_0001>

<llo_original>
// kernel: tpu_custom_call.1
$region0: #{tpu_custom_call.1}
  #allocation0 [shape = 'u32[]', space=smem, size = 0x4, offset = 0x4, fixed_abs, tag = 'smem constant byte address 0x4 - core index']
  #allocation1 [shape = 'u32[72,128]{1,0:T(1,128)}', space=vmem, size = 0x9000, scoped, tag = 'internal scratch']
  #allocation2 [shape = 'f32[8,18]{1,0:T(8,128)}', space=vmem, size = 0x1000, scoped, tag = 'scratch operand']
  #allocation3 [shape = 'f32[8,20]{1,0:T(8,128)}', space=vmem, size = 0x1000, scoped, tag = 'scratch operand']
  %s0 = inlined_call_operand.vmem [shape: f32[2,4,16], index: 0, kind: input, shape index: {}]
  %s1 = inlined_call_operand.vmem [shape: f32[8,24], index: 1, kind: input, shape index: {}]
  %s2 = inlined_call_operand.vmem [shape: f32[8,24], index: 2, kind: input, shape index: {}]
  %s3 = inlined_call_operand.vmem [shape: f32[8,8], index: 3, kind: input, shape index: {}]
  %s4 = inlined_call_operand.vmem [shape: f32[8,1], index: 4, kind: input, shape index: {}]
  %s5 = inlined_call_operand.vmem [shape: f32[8,1], index: 5, kind: input, shape index: {}]
  %s6 = inlined_call_operand.vmem [shape: f32[8,1], index: 6, kind: input, shape index: {}]
  %s7 = inlined_call_operand.vmem [shape: f32[8,1], index: 7, kind: input, shape index: {}]
  %s8 = inlined_call_operand.vmem [shape: f32[8,1], index: 8, kind: input, shape index: {}]
  %s9 = inlined_call_operand.vmem [shape: f32[8,1], index: 9, kind: input, shape index: {}]
  %s10 = inlined_call_operand.hbm [shape: f32[2,8,16], index: 10, kind: output, shape index: {}]
  %s11 = sld [smem:[#allocation0]]
  $region73: #{tpu_custom_call.1} parent=0
    _
  %s13 = ssub.s32 1, %s11
  %s14 = scalar_select 0, %s13, %s11
  $region1: #{tpu_custom_call.1} parent=0
    #allocation4 [shape = 'u8[8192]{0}', space=vmem, size = 0x2000, scoped, tag = 'output window, operand 0']
    #allocation5 [shape = 's32[2]{0}', space=sflag, size = 0x8, scoped, tag = 'scoped memory for tpu_custom_call.1']
    %15 = vsyncpa [#allocation5], 0
    %s16 = scalar_lea.sflag [#allocation5], 1
    %17 = vsyncpa %s16, 0
    loop: start=0, step=1, limit=4
    $region2: #{tpu_custom_call.1} parent=1 // loop_pre_header
      _
    $region3: #{tpu_custom_call.1} parent=1 // loop_header
      %s19 = sphi 0, %s23
      %p20 = scmp.ge.s32.totalorder %s19, 4
      %s29 = sphi 0, %s31
      %s32 = sphi 0, %s29
      %s33 = sphi 0, %s32
      %s49 = sphi 0, %s33
      %s53 = sphi 0, %s53
      %s55 = sphi 0, %s53
      %s56 = sphi 0, %s55
      %s70 = sphi 0, %s56
      %s74 = sphi 0, %s74
      %s76 = sphi 0, %s74
      %s77 = sphi 0, %s76
      %s91 = sphi 0, %s77
      %s95 = sphi 0, %s95
      %s97 = sphi 0, %s95
      %s98 = sphi 0, %s97
      %s112 = sphi 0, %s98
      %s116 = sphi 0, %s116
      %s118 = sphi 0, %s116
      %s119 = sphi 0, %s118
      %s133 = sphi 0, %s119
      %s137 = sphi 0, %s137
      %s139 = sphi 0, %s137
      %s140 = sphi 0, %s139
      %s154 = sphi 0, %s140
      %s158 = sphi 0, %s158
      %s160 = sphi 0, %s158
      %s161 = sphi 0, %s160
      %s175 = sphi 0, %s161
      %s179 = sphi 0, %s179
      %s181 = sphi 0, %s179
      %s182 = sphi 0, %s181
      %s196 = sphi 0, %s182
      %s200 = sphi 0, %s200
      %s202 = sphi 0, %s200
      %s203 = sphi 0, %s202
      %s217 = sphi 0, %s203
      %s221 = sphi 0, %s221
      %s223 = sphi 0, %s221
      %s224 = sphi 0, %s223
      %s238 = sphi 0, %s224
      %s244 = sphi 0, %s246
      %s247 = sphi 0, %s244
      %s248 = sphi 0, %s247
      %s264 = sphi 0, %s248
    $region4: #{tpu_custom_call.1} parent=1 // loop_header_branch
      %22 = sbr.rel (%p20) target = $region8
    $region5: #{tpu_custom_call.1} parent=1 // loop_body
      %s24 = ssub.s32 %s19, 1
      %s25 = ssub.s32 %s19, 2
      %s26 = sadd.s32 %s19, 1
      %s27 = ssub.s32 %s19, %s26
      %p28 = scmp.eq.s32.totalorder %s27, 0
      %s30 = sadd.s32 %s29, 1
      %s31 = scalar_select %p28, %s29, %s30
      %p34 = pneg %p28
      %p35 = scmp.eq.s32.totalorder %s19, 1
      %p36 = por %p34, %p35
      %p37 = scmp.ne.s32.totalorder %s29, %s32
      %p38 = scmp.eq.s32.totalorder %s19, 0
      %p39 = por %p37, %p38
      %p40 = scmp.ne.s32.totalorder %s29, %s32
      %p41 = scmp.eq.s32.totalorder %s24, 1
      %p42 = por %p40, %p41
      %p43 = scmp.ne.s32.totalorder %s32, %s33
      %p44 = scmp.eq.s32.totalorder %s24, 0
      %p45 = por %p43, %p44
      %p46 = scmp.ne.s32.totalorder %s32, %s33
      %p47 = scmp.eq.s32.totalorder %s25, 1
      %p48 = por %p46, %p47
      %p50 = scmp.ne.s32.totalorder %s33, %s49
      %p51 = scmp.eq.s32.totalorder %s25, 0
      %p52 = por %p50, %p51
      %s54 = sadd.s32 %s53, 1
      %p57 = scmp.eq.s32.totalorder %s19, 1
      %p58 = scmp.ne.s32.totalorder %s53, %s55
      %p59 = scmp.eq.s32.totalorder %s19, 0
      %p60 = por %p58, %p59
      %p61 = scmp.ne.s32.totalorder %s53, %s55
      %p62 = scmp.eq.s32.totalorder %s24, 1
      %p63 = por %p61, %p62
      %p64 = scmp.ne.s32.totalorder %s55, %s56
      %p65 = scmp.eq.s32.totalorder %s24, 0
      %p66 = por %p64, %p65
      %p67 = scmp.ne.s32.totalorder %s55, %s56
      %p68 = scmp.eq.s32.totalorder %s25, 1
      %p69 = por %p67, %p68
      %p71 = scmp.ne.s32.totalorder %s56, %s70
      %p72 = scmp.eq.s32.totalorder %s25, 0
      %p73 = por %p71, %p72
      %s75 = sadd.s32 %s74, 1
      %p78 = scmp.eq.s32.totalorder %s19, 1
      %p79 = scmp.ne.s32.totalorder %s74, %s76
      %p80 = scmp.eq.s32.totalorder %s19, 0
      %p81 = por %p79, %p80
      %p82 = scmp.ne.s32.totalorder %s74, %s76
      %p83 = scmp.eq.s32.totalorder %s24, 1
      %p84 = por %p82, %p83
      %p85 = scmp.ne.s32.totalorder %s76, %s77
      %p86 = scmp.eq.s32.totalorder %s24, 0
      %p87 = por %p85, %p86
      %p88 = scmp.ne.s32.totalorder %s76, %s77
      %p89 = scmp.eq.s32.totalorder %s25, 1
      %p90 = por %p88, %p89
      %p92 = scmp.ne.s32.totalorder %s77, %s91
      %p93 = scmp.eq.s32.totalorder %s25, 0
      %p94 = por %p92, %p93
      %s96 = sadd.s32 %s95, 1
      %p99 = scmp.eq.s32.totalorder %s19, 1
      %p100 = scmp.ne.s32.totalorder %s95, %s97
      %p101 = scmp.eq.s32.totalorder %s19, 0
      %p102 = por %p100, %p101
      %p103 = scmp.ne.s32.totalorder %s95, %s97
      %p104 = scmp.eq.s32.totalorder %s24, 1
      %p105 = por %p103, %p104
      %p106 = scmp.ne.s32.totalorder %s97, %s98
      %p107 = scmp.eq.s32.totalorder %s24, 0
      %p108 = por %p106, %p107
      %p109 = scmp.ne.s32.totalorder %s97, %s98
      %p110 = scmp.eq.s32.totalorder %s25, 1
      %p111 = por %p109, %p110
      %p113 = scmp.ne.s32.totalorder %s98, %s112
      %p114 = scmp.eq.s32.totalorder %s25, 0
      %p115 = por %p113, %p114
      %s117 = sadd.s32 %s116, 1
      %p120 = scmp.eq.s32.totalorder %s19, 1
      %p121 = scmp.ne.s32.totalorder %s116, %s118
      %p122 = scmp.eq.s32.totalorder %s19, 0
      %p123 = por %p121, %p122
      %p124 = scmp.ne.s32.totalorder %s116, %s118
      %p125 = scmp.eq.s32.totalorder %s24, 1
      %p126 = por %p124, %p125
      %p127 = scmp.ne.s32.totalorder %s118, %s119
      %p128 = scmp.eq.s32.totalorder %s24, 0
      %p129 = por %p127, %p128
      %p130 = scmp.ne.s32.totalorder %s118, %s119
      %p131 = scmp.eq.s32.totalorder %s25, 1
      %p132 = por %p130, %p131
      %p134 = scmp.ne.s32.totalorder %s119, %s133
      %p135 = scmp.eq.s32.totalorder %s25, 0
      %p136 = por %p134, %p135
      %s138 = sadd.s32 %s137, 1
      %p141 = scmp.eq.s32.totalorder %s19, 1
      %p142 = scmp.ne.s32.totalorder %s137, %s139
      %p143 = scmp.eq.s32.totalorder %s19, 0
      %p144 = por %p142, %p143
      %p145 = scmp.ne.s32.totalorder %s137, %s139
      %p146 = scmp.eq.s32.totalorder %s24, 1
      %p147 = por %p145, %p146
      %p148 = scmp.ne.s32.totalorder %s139, %s140
      %p149 = scmp.eq.s32.totalorder %s24, 0
      %p150 = por %p148, %p149
      %p151 = scmp.ne.s32.totalorder %s139, %s140
      %p152 = scmp.eq.s32.totalorder %s25, 1
      %p153 = por %p151, %p152
      %p155 = scmp.ne.s32.totalorder %s140, %s154
      %p156 = scmp.eq.s32.totalorder %s25, 0
      %p157 = por %p155, %p156
      %s159 = sadd.s32 %s158, 1
      %p162 = scmp.eq.s32.totalorder %s19, 1
      %p163 = scmp.ne.s32.totalorder %s158, %s160
      %p164 = scmp.eq.s32.totalorder %s19, 0
      %p165 = por %p163, %p164
      %p166 = scmp.ne.s32.totalorder %s158, %s160
      %p167 = scmp.eq.s32.totalorder %s24, 1
      %p168 = por %p166, %p167
      %p169 = scmp.ne.s32.totalorder %s160, %s161
      %p170 = scmp.eq.s32.totalorder %s24, 0
      %p171 = por %p169, %p170
      %p172 = scmp.ne.s32.totalorder %s160, %s161
      %p173 = scmp.eq.s32.totalorder %s25, 1
      %p174 = por %p172, %p173
      %p176 = scmp.ne.s32.totalorder %s161, %s175
      %p177 = scmp.eq.s32.totalorder %s25, 0
      %p178 = por %p176, %p177
      %s180 = sadd.s32 %s179, 1
      %p183 = scmp.eq.s32.totalorder %s19, 1
      %p184 = scmp.ne.s32.totalorder %s179, %s181
      %p185 = scmp.eq.s32.totalorder %s19, 0
      %p186 = por %p184, %p185
      %p187 = scmp.ne.s32.totalorder %s179, %s181
      %p188 = scmp.eq.s32.totalorder %s24, 1
      %p189 = por %p187, %p188
      %p190 = scmp.ne.s32.totalorder %s181, %s182
      %p191 = scmp.eq.s32.totalorder %s24, 0
      %p192 = por %p190, %p191
      %p193 = scmp.ne.s32.totalorder %s181, %s182
      %p194 = scmp.eq.s32.totalorder %s25, 1
      %p195 = por %p193, %p194
      %p197 = scmp.ne.s32.totalorder %s182, %s196
      %p198 = scmp.eq.s32.totalorder %s25, 0
      %p199 = por %p197, %p198
      %s201 = sadd.s32 %s200, 1
      %p204 = scmp.eq.s32.totalorder %s19, 1
      %p205 = scmp.ne.s32.totalorder %s200, %s202
      %p206 = scmp.eq.s32.totalorder %s19, 0
      %p207 = por %p205, %p206
      %p208 = scmp.ne.s32.totalorder %s200, %s202
      %p209 = scmp.eq.s32.totalorder %s24, 1
      %p210 = por %p208, %p209
      %p211 = scmp.ne.s32.totalorder %s202, %s203
      %p212 = scmp.eq.s32.totalorder %s24, 0
      %p213 = por %p211, %p212
      %p214 = scmp.ne.s32.totalorder %s202, %s203
      %p215 = scmp.eq.s32.totalorder %s25, 1
      %p216 = por %p214, %p215
      %p218 = scmp.ne.s32.totalorder %s203, %s217
      %p219 = scmp.eq.s32.totalorder %s25, 0
      %p220 = por %p218, %p219
      %s222 = sadd.s32 %s221, 1
      %p225 = scmp.eq.s32.totalorder %s19, 1
      %p226 = scmp.ne.s32.totalorder %s221, %s223
      %p227 = scmp.eq.s32.totalorder %s19, 0
      %p228 = por %p226, %p227
      %p229 = scmp.ne.s32.totalorder %s221, %s223
      %p230 = scmp.eq.s32.totalorder %s24, 1
      %p231 = por %p229, %p230
      %p232 = scmp.ne.s32.totalorder %s223, %s224
      %p233 = scmp.eq.s32.totalorder %s24, 0
      %p234 = por %p232, %p233
      %p235 = scmp.ne.s32.totalorder %s223, %s224
      %p236 = scmp.eq.s32.totalorder %s25, 1
      %p237 = por %p235, %p236
      %p239 = scmp.ne.s32.totalorder %s224, %s238
      %p240 = scmp.eq.s32.totalorder %s25, 0
      %p241 = por %p239, %p240
      %s242 = ssub.s32 %s19, %s26
      %p243 = scmp.eq.s32.totalorder %s242, 0
      %s245 = sadd.s32 %s244, 1
      %s246 = scalar_select %p243, %s244, %s245
      %p249 = pneg %p243
      %p250 = scmp.eq.s32.totalorder %s19, 1
      %p251 = por %p249, %p250
      %p252 = scmp.ne.s32.totalorder %s244, %s247
      %p253 = scmp.eq.s32.totalorder %s19, 0
      %p254 = por %p252, %p253
      %p255 = scmp.ne.s32.totalorder %s244, %s247
      %p256 = scmp.eq.s32.totalorder %s24, 1
      %p257 = por %p255, %p256
      %p258 = scmp.ne.s32.totalorder %s247, %s248
      %p259 = scmp.eq.s32.totalorder %s24, 0
      %p260 = por %p258, %p259
      %p261 = scmp.ne.s32.totalorder %s247, %s248
      %p262 = scmp.eq.s32.totalorder %s25, 1
      %p263 = por %p261, %p262
      %p265 = scmp.ne.s32.totalorder %s248, %s264
      %p266 = scmp.eq.s32.totalorder %s25, 0
      %p267 = por %p265, %p266
      %p268 = scmp.le.s32.totalorder 1, %s19
      %p269 = scmp.lt.s32.totalorder %s19, 3
      %p270 = pnand %p268, %p269
      %p271 = pneg %p270
      // Predicated region
      $region9: #{tpu_custom_call.1} parent=5 // pred_check
        _
      $region10: #{tpu_custom_call.1} parent=5 // pred_check_branch
        %273 = sbr.rel (%p270) target = $region12
      $region11: #{tpu_custom_call.1} parent=5 // pred_region
        %s274 = ssub.s32 %s19, 1
        // Predicated region
        $region13: #{tpu_custom_call.1} parent=11 // pred_check
          %p275 = pneg %p66
        $region14: #{tpu_custom_call.1} parent=11 // pred_check_branch
          %277 = sbr.rel (%p275) target = $region16
        $region15: #{tpu_custom_call.1} parent=11 // pred_region
          _
        $region16: #{tpu_custom_call.1} parent=11 // pred_fallthru
          _
        // Predicated region
        $region17: #{tpu_custom_call.1} parent=11 // pred_check
          %p278 = pneg %p87
        $region18: #{tpu_custom_call.1} parent=11 // pred_check_branch
          %280 = sbr.rel (%p278) target = $region20
        $region19: #{tpu_custom_call.1} parent=11 // pred_region
          _
        $region20: #{tpu_custom_call.1} parent=11 // pred_fallthru
          _
        // Predicated region
        $region21: #{tpu_custom_call.1} parent=11 // pred_check
          %p281 = pneg %p108
        $region22: #{tpu_custom_call.1} parent=11 // pred_check_branch
          %283 = sbr.rel (%p281) target = $region24
        $region23: #{tpu_custom_call.1} parent=11 // pred_region
          _
        $region24: #{tpu_custom_call.1} parent=11 // pred_fallthru
          _
        // Predicated region
        $region25: #{tpu_custom_call.1} parent=11 // pred_check
          %p284 = pneg %p129
        $region26: #{tpu_custom_call.1} parent=11 // pred_check_branch
          %286 = sbr.rel (%p284) target = $region28
        $region27: #{tpu_custom_call.1} parent=11 // pred_region
          _
        $region28: #{tpu_custom_call.1} parent=11 // pred_fallthru
          _
        // Predicated region
        $region29: #{tpu_custom_call.1} parent=11 // pred_check
          %p287 = pneg %p150
        $region30: #{tpu_custom_call.1} parent=11 // pred_check_branch
          %289 = sbr.rel (%p287) target = $region32
        $region31: #{tpu_custom_call.1} parent=11 // pred_region
          _
        $region32: #{tpu_custom_call.1} parent=11 // pred_fallthru
          _
        // Predicated region
        $region33: #{tpu_custom_call.1} parent=11 // pred_check
          %p290 = pneg %p171
        $region34: #{tpu_custom_call.1} parent=11 // pred_check_branch
          %292 = sbr.rel (%p290) target = $region36
        $region35: #{tpu_custom_call.1} parent=11 // pred_region
          _
        $region36: #{tpu_custom_call.1} parent=11 // pred_fallthru
          _
        // Predicated region
        $region37: #{tpu_custom_call.1} parent=11 // pred_check
          %p293 = pneg %p192
        $region38: #{tpu_custom_call.1} parent=11 // pred_check_branch
          %295 = sbr.rel (%p293) target = $region40
        $region39: #{tpu_custom_call.1} parent=11 // pred_region
          _
        $region40: #{tpu_custom_call.1} parent=11 // pred_fallthru
          _
        // Predicated region
        $region41: #{tpu_custom_call.1} parent=11 // pred_check
          %p296 = pneg %p213
        $region42: #{tpu_custom_call.1} parent=11 // pred_check_branch
          %298 = sbr.rel (%p296) target = $region44
        $region43: #{tpu_custom_call.1} parent=11 // pred_region
          _
        $region44: #{tpu_custom_call.1} parent=11 // pred_fallthru
          _
        // Predicated region
        $region45: #{tpu_custom_call.1} parent=11 // pred_check
          %p299 = pneg %p234
        $region46: #{tpu_custom_call.1} parent=11 // pred_check_branch
          %301 = sbr.rel (%p299) target = $region48
        $region47: #{tpu_custom_call.1} parent=11 // pred_region
          _
        $region48: #{tpu_custom_call.1} parent=11 // pred_fallthru
          _
      $region12: #{tpu_custom_call.1} parent=5 // pred_fallthru
        _
      %p302 = scmp.lt.s32.totalorder %s19, 2
      // Predicated region
      $region49: #{tpu_custom_call.1} parent=5 // pred_check
        %p303 = pneg %p302
      $region50: #{tpu_custom_call.1} parent=5 // pred_check_branch
        %305 = sbr.rel (%p303) target = $region52
      $region51: #{tpu_custom_call.1} parent=5 // pred_region
        // Predicated region
        $region53: #{tpu_custom_call.1} parent=51 // pred_check
          %p306 = pneg %p39
        $region54: #{tpu_custom_call.1} parent=51 // pred_check_branch
          %308 = sbr.rel (%p306) target = $region56
        $region55: #{tpu_custom_call.1} parent=51 // pred_region
          %p309 = scmp.lt.s32.totalorder %s19, 1
          %s310 = scalar_select %p309, %s19, 1
          %s311 = smul.addr %s310, 4
          %s312 = scalar_lea.vmem %s0, %s311
        $region56: #{tpu_custom_call.1} parent=51 // pred_fallthru
          _
      $region52: #{tpu_custom_call.1} parent=5 // pred_fallthru
        _
      %p313 = scmp.le.s32.totalorder 1, %s19
      %p314 = scmp.lt.s32.totalorder %s19, 3
      %p315 = pnand %p313, %p314
      %p316 = pneg %p315
      // Predicated region
      $region57: #{tpu_custom_call.1} parent=5 // pred_check
        _
      $region58: #{tpu_custom_call.1} parent=5 // pred_check_branch
        %318 = sbr.rel (%p315) target = $region60
      $region59: #{tpu_custom_call.1} parent=5 // pred_region
        %s319 = ssub.s32 %s19, 1
        %p320 = scmp.lt.s32.totalorder %s24, 1
        %s321 = scalar_select %p320, %s24, 1
        %s322 = smul.addr %s321, 4
        %s323 = scalar_lea.vmem %s0, %s322
        %p324 = pneg %p45
        %p325 = pneg %p42
        %p326 = pneg %p66
        %p327 = pneg %p63
        %p328 = pneg %p87
        %p329 = pneg %p84
        %p330 = pneg %p108
        %p331 = pneg %p105
        %p332 = pneg %p129
        %p333 = pneg %p126
        %p334 = pneg %p150
        %p335 = pneg %p147
        %p336 = pneg %p171
        %p337 = pneg %p168
        %p338 = pneg %p192
        %p339 = pneg %p189
        %p340 = pneg %p213
        %p341 = pneg %p210
        %p342 = pneg %p234
        %p343 = pneg %p231
        %p344 = pneg %p260
        %p345 = pneg %p257
        %s346 = sand.u32 %s247, 1
        %s347 = scalar_lea.sflag [#allocation5], %s346
        %s348 = sand.u32 %s247, 1
        %s349 = smul.addr %s348, 8
        %s350 = scalar_lea.vmem [#allocation4], %s349
        %p351 = scmp.lt.s32.totalorder %s24, 1
        %s352 = scalar_select %p351, %s24, 1
        %s353 = smul.addr %s352, 4
        %s354 = scalar_lea.vmem %s0, %s353
        %vm355 = vcmask 146432
        %356 = vst.msk [vmem:[#allocation2] sm:$0xff] %vm355, 0.0
        %v357 = vld [vmem:[%s354] sm:$0xf]
        %359 = vrot.lane.b32.xlu0 %v357, 1
        %v360 = vpop.permute.xlu0 %359
        %vm362 = vcmask 134152
        %363 = vst.msk [vmem:[#allocation2] sm:$0xf] %vm362, %v360
        %v364 = vld [vmem:[%s1] sm:$0xff]
        %v365 = vld [vmem:[#allocation2] sm:$0xff]
        %367 = vrot.lane.b32.xlu0 %v365, 127
        %v368 = vpop.permute.xlu0 %367
        %370 = vrot.lane.b32.xlu0 %v365, 126
        %v371 = vpop.permute.xlu0 %370
        %vm373 = vcmask 195584
        %v375 = vsel %vm373, %v364, 0
        %377 = vmatpush.msra.mxu0 0.0
        %378 = vmatpush.msra.mxu0 0.0
        %379 = vmatpush.msra.mxu0 0.0
        %380 = vmatpush.msra.mxu0 0.0
        %381 = vmatpush.msra.mxu0 0.0
        %382 = vmatpush.msra.mxu0 0.0
        %383 = vmatpush.msra.mxu0 0.0
        %384 = vmatpush.msra.mxu0 0.0
        %385 = vmatpush.msra.mxu0 0.0
        %386 = vmatpush.msra.mxu0 0.0
        %387 = vmatpush.msra.mxu0 0.0
        %388 = vmatpush.msra.mxu0 0.0
        %389 = vmatpush.msra.mxu0 0.0
        %390 = vmatpush.msra.mxu0 %v371
        %391 = vmatpush.msra.mxu0 %v368
        %392 = vmatpush.msra.mxu0 %v365
        %393 = vmatmul.f32.gmra.mxu0 %v375
        %v394 = vpop.f32.mrf.mxu0
        %v395 = vadd.f32 0.0, %v394
        %396 = vdwg.mxu0
        %v397 = vld [vmem:[%s4] sm:$0xff]
        %399 = vset.pattern.permute.xlu0 0
        %400 = vperm.xlu0 %399, %v397
        %v401 = vpop.permute.xlu0 %400
        %v403 = vmul.f32 %v395, %v401
        %v404 = vld [vmem:[%s5] sm:$0xff]
        %406 = vset.pattern.permute.xlu0 0
        %407 = vperm.xlu0 %406, %v404
        %v408 = vpop.permute.xlu0 %407
        %v410 = vadd.f32 %v403, %v408
        %v411 = vmax.f32 %v410, 0.0
        %vm412 = vcmask 162816
        %413 = vst.msk [vmem:[#allocation3] sm:$0xff] %vm412, 0.0
        %415 = vrot.lane.b32.xlu0 %v411, 2
        %v416 = vpop.permute.xlu0 %415
        %vm418 = vcmask 146448
        %419 = vst.msk [vmem:[#allocation3] sm:$0xff] %vm418, %v416
        %v420 = vld [vmem:[%s2] sm:$0xff]
        %v421 = vld [vmem:[#allocation3] sm:$0xff]
        %423 = vrot.lane.b32.xlu0 %v421, 126
        %v424 = vpop.permute.xlu0 %423
        %426 = vrot.lane.b32.xlu0 %v421, 124
        %v427 = vpop.permute.xlu0 %426
        %v430 = vsel %vm373, %v420, 0
        %432 = vmatpush.msra.mxu0 0.0
        %433 = vmatpush.msra.mxu0 0.0
        %434 = vmatpush.msra.mxu0 0.0
        %435 = vmatpush.msra.mxu0 0.0
        %436 = vmatpush.msra.mxu0 0.0
        %437 = vmatpush.msra.mxu0 0.0
        %438 = vmatpush.msra.mxu0 0.0
        %439 = vmatpush.msra.mxu0 0.0
        %440 = vmatpush.msra.mxu0 0.0
        %441 = vmatpush.msra.mxu0 0.0
        %442 = vmatpush.msra.mxu0 0.0
        %443 = vmatpush.msra.mxu0 0.0
        %444 = vmatpush.msra.mxu0 0.0
        %445 = vmatpush.msra.mxu0 %v427
        %446 = vmatpush.msra.mxu0 %v424
        %447 = vmatpush.msra.mxu0 %v421
        %448 = vmatmul.f32.gmra.mxu0 %v430
        %v449 = vpop.f32.mrf.mxu0
        %v450 = vadd.f32 0.0, %v449
        %451 = vdwg.mxu0
        %v452 = vld [vmem:[%s6] sm:$0xff]
        %454 = vset.pattern.permute.xlu0 0
        %455 = vperm.xlu0 %454, %v452
        %v456 = vpop.permute.xlu0 %455
        %v458 = vmul.f32 %v450, %v456
        %v459 = vld [vmem:[%s7] sm:$0xff]
        %461 = vset.pattern.permute.xlu0 0
        %462 = vperm.xlu0 %461, %v459
        %v463 = vpop.permute.xlu0 %462
        %v465 = vadd.f32 %v458, %v463
        %v466 = vld [vmem:[%s3] sm:$0xff]
        %v467 = vld [vmem:[#allocation2] sm:$0xff]
        %469 = vrot.lane.b32.xlu0 %v467, 127
        %v470 = vpop.permute.xlu0 %469
        %vm472 = vcmask 64512
        %v474 = vsel %vm472, %v466, 0
        %476 = vmatpush.msra.mxu0 0.0
        %477 = vmatpush.msra.mxu0 0.0
        %478 = vmatpush.msra.mxu0 0.0
        %479 = vmatpush.msra.mxu0 0.0
        %480 = vmatpush.msra.mxu0 0.0
        %481 = vmatpush.msra.mxu0 0.0
        %482 = vmatpush.msra.mxu0 0.0
        %483 = vmatpush.msra.mxu0 0.0
        %484 = vmatpush.msra.mxu0 0.0
        %485 = vmatpush.msra.mxu0 0.0
        %486 = vmatpush.msra.mxu0 0.0
        %487 = vmatpush.msra.mxu0 0.0
        %488 = vmatpush.msra.mxu0 0.0
        %489 = vmatpush.msra.mxu0 0.0
        %490 = vmatpush.msra.mxu0 0.0
        %491 = vmatpush.msra.mxu0 %v470
        %492 = vmatmul.f32.gmra.mxu0 %v474
        %v493 = vpop.f32.mrf.mxu0
        %v494 = vadd.f32 0.0, %v493
        %495 = vdwg.mxu0
        %v496 = vld [vmem:[%s8] sm:$0xff]
        %498 = vset.pattern.permute.xlu0 0
        %499 = vperm.xlu0 %498, %v496
        %v500 = vpop.permute.xlu0 %499
        %v502 = vmul.f32 %v494, %v500
        %v503 = vld [vmem:[%s9] sm:$0xff]
        %505 = vset.pattern.permute.xlu0 0
        %506 = vperm.xlu0 %505, %v503
        %v507 = vpop.permute.xlu0 %506
        %v509 = vadd.f32 %v502, %v507
        %v510 = vmax.f32 %v509, 0.0
        %v511 = vadd.f32 %v465, %v510
        %v512 = vmax.f32 %v511, 0.0
        %vm513 = vcmask 130048
        %514 = vst.msk [vmem:[%s350] sm:$0xff] %vm513, %v512
        %s515 = sand.u32 %s247, 1
        %s516 = scalar_lea.sflag [#allocation5], %s515
        %s517 = sand.u32 %s247, 1
        %s518 = smul.addr %s517, 8
        %s519 = scalar_lea.vmem [#allocation4], %s518
        // Predicated region
        $region61: #{tpu_custom_call.1} parent=59 // pred_check
          %p520 = pneg %p257
        $region62: #{tpu_custom_call.1} parent=59 // pred_check_branch
          %522 = sbr.rel (%p520) target = $region64
        $region63: #{tpu_custom_call.1} parent=59 // pred_region
          %524 = vsyncadd %s516, 0
          %s525 = smul.addr %s24, 8
          %s526 = scalar_lea.hbm %s10, %s525
          %s528 = sshll.u32 %s519, 4
          %s529 = int_to_ptr.vmem [resolvable:$true] %s528
          %s530 = sshll.u32 %s526, 4
          %s531 = int_to_ptr.hbm [resolvable:$true] %s530
          %533 = dma.vmem_to_hbm [thread:$0]  %s529, 128, %s531, %s516
        $region64: #{tpu_custom_call.1} parent=59 // pred_fallthru
          _
      $region60: #{tpu_custom_call.1} parent=5 // pred_fallthru
        _
      %p534 = scmp.le.s32.totalorder 2, %s19
      // Predicated region
      $region65: #{tpu_custom_call.1} parent=5 // pred_check
        %p535 = pneg %p534
      $region66: #{tpu_custom_call.1} parent=5 // pred_check_branch
        %537 = sbr.rel (%p535) target = $region68
      $region67: #{tpu_custom_call.1} parent=5 // pred_region
        %s538 = ssub.s32 %s19, 2
        // Predicated region
        $region69: #{tpu_custom_call.1} parent=67 // pred_check
          %p539 = pneg %p263
        $region70: #{tpu_custom_call.1} parent=67 // pred_check_branch
          %541 = sbr.rel (%p539) target = $region72
        $region71: #{tpu_custom_call.1} parent=67 // pred_region
          %s542 = sand.u32 %s248, 1
          %s543 = scalar_lea.sflag [#allocation5], %s542
          %s544 = sand.u32 %s248, 1
          %s545 = smul.addr %s544, 8
          %s546 = scalar_lea.vmem [#allocation4], %s545
          %548 = dma.done %s543, 128
        $region72: #{tpu_custom_call.1} parent=67 // pred_fallthru
          _
      $region68: #{tpu_custom_call.1} parent=5 // pred_fallthru
        _
    $region6: #{tpu_custom_call.1} parent=1 // loop_footer
      %s23 = sadd.s32 1, %s19
    $region7: #{tpu_custom_call.1} parent=1 // loop_footer_branch
      %18 = sbr.rel target = $region3
    $region8: #{tpu_custom_call.1} parent=1 // loop_exit
      _
    %549 = vsyncpa [#allocation5], 1
    %s550 = scalar_lea.sflag [#allocation5], 1
    %551 = vsyncpa %s550, 1

</llo_original>
